<compile_context>
chip_gen: v5e
topology: v5e:2x2
jax: 0.10.0
libtpu: 0.0.40
codegen_flags: <defaults>
</compile_context>

<pallas_src>
import jax
import jax.numpy as jnp
from jax.experimental import pallas as pl
from jax.experimental.pallas import tpu as pltpu

NEG_SLOPE = 0.01  # F.leaky_relu default negative_slope


def _leaky_relu(x):
    return jnp.where(x >= 0, x, NEG_SLOPE * x)


def _round_up(n, m):
    return ((n + m - 1) // m) * m


def residual_block_kernel(x_ref, w1_ref, b1_ref, w2_ref, b2_ref, o_ref):
    """One batch tile: x_ref [TB, Dp], weights resident, all feature dims lane-dense."""
    x = x_ref[...]                                                    # [TB, Dp] f32
    # fc1 on the MXU (operand dtype follows the stored weight dtype; f32 accumulate).
    h = jnp.dot(x.astype(w1_ref.dtype), w1_ref[...],
                preferred_element_type=jnp.float32) + b1_ref[...]     # [TB, Hp] f32
    h = _leaky_relu(h)
    # fc2 on the MXU.
    y = jnp.dot(h.astype(w2_ref.dtype), w2_ref[...],
                preferred_element_type=jnp.float32) + b2_ref[...]     # [TB, Dp] f32
    # Residual add + final leaky_relu in f32, full-width lane-dense store.
    o_ref[...] = _leaky_relu(y + x)


def residual_block(x, w1, b1, w2, b2, *, block_b=256, use_bf16_matmul=True):
    """x: [B, D]; w1: [D, H]; b1: [H]; w2: [H, D]; b2: [D]  (weights pre-transposed [in, out])."""
    B, D = x.shape
    H = w1.shape[1]
    assert w2.shape == (H, D), "residual add requires output_dim == input_dim"

    # Lane-dense (pad feature dims to multiples of 128) and sublane-aligned batch tile.
    Dp = _round_up(D, 128)
    Hp = _round_up(H, 128)
    TB = min(_round_up(B, 8), _round_up(block_b, 8))
    Bp = _round_up(B, TB)

    mat_dtype = jnp.bfloat16 if use_bf16_matmul else jnp.float32

    # Zero-padding is inert: padded x cols are 0, padded weight rows/cols are 0,
    # padded biases are 0 -> padded output cols are leaky_relu(0) = 0, sliced off below.
    # (In a real model these padded/cast weights would be prepared once, not per call.)
    xp = jnp.zeros((Bp, Dp), jnp.float32).at[:B, :D].set(x.astype(jnp.float32))
    w1p = jnp.zeros((Dp, Hp), mat_dtype).at[:D, :H].set(w1.astype(mat_dtype))
    w2p = jnp.zeros((Hp, Dp), mat_dtype).at[:H, :D].set(w2.astype(mat_dtype))
    b1p = jnp.zeros((1, Hp), jnp.float32).at[0, :H].set(b1.astype(jnp.float32))
    b2p = jnp.zeros((1, Dp), jnp.float32).at[0, :D].set(b2.astype(jnp.float32))

    grid = (Bp // TB,)
    out = pl.pallas_call(
        residual_block_kernel,
        out_shape=jax.ShapeDtypeStruct((Bp, Dp), jnp.float32),
        grid=grid,
        in_specs=[
            pl.BlockSpec((TB, Dp), lambda i: (i, 0)),   # x: pipelined batch tiles
            pl.BlockSpec((Dp, Hp), lambda i: (0, 0)),   # w1: DMA'd once, VMEM-resident
            pl.BlockSpec((1, Hp), lambda i: (0, 0)),    # b1: resident
            pl.BlockSpec((Hp, Dp), lambda i: (0, 0)),   # w2: resident
            pl.BlockSpec((1, Dp), lambda i: (0, 0)),    # b2: resident
        ],
        out_specs=pl.BlockSpec((TB, Dp), lambda i: (i, 0)),
        compiler_params=pltpu.CompilerParams(
            # Independent batch tiles -> parallel (shards across TCs on v7x).
            dimension_semantics=("parallel",),
        ),
    )(xp, w1p, b1p, w2p, b2p)

    return out[:B, :D]


def reference(x, w1, b1, w2, b2):
    h = _leaky_relu(x @ w1 + b1)
    y = h @ w2 + b2 + x
    return _leaky_relu(y)


if __name__ == "__main__":
    # Small shapes consistent with the module (residual => output_dim == input_dim).
    B, input_dim, hidden_dim, output_dim = 64, 32, 64, 32

    key = jax.random.PRNGKey(0)
    kx, kw1, kb1, kw2, kb2 = jax.random.split(key, 5)

    x = jax.random.normal(kx, (B, input_dim), dtype=jnp.float32)
    # nn.Linear-style init (uniform +/- 1/sqrt(fan_in)); weights stored pre-transposed [in, out].
    lim1 = 1.0 / jnp.sqrt(jnp.float32(input_dim))
    lim2 = 1.0 / jnp.sqrt(jnp.float32(hidden_dim))
    w1 = jax.random.uniform(kw1, (input_dim, hidden_dim), jnp.float32, -lim1, lim1)
    b1 = jax.random.uniform(kb1, (hidden_dim,), jnp.float32, -lim1, lim1)
    w2 = jax.random.uniform(kw2, (hidden_dim, output_dim), jnp.float32, -lim2, lim2)
    b2 = jax.random.uniform(kb2, (output_dim,), jnp.float32, -lim2, lim2)

    ref = reference(x, w1, b1, w2, b2)

    # 1) Exact-semantics path: f32 matmul operands, multi-step batch grid (block_b=32 -> 2 tiles).
    out_f32 = residual_block(x, w1, b1, w2, b2, block_b=32, use_bf16_matmul=False)
    jax.block_until_ready(out_f32)
    assert out_f32.shape == (B, output_dim)
    assert jnp.allclose(out_f32, ref, atol=1e-5, rtol=1e-5), "f32 kernel mismatch vs reference"

    # 2) Recommended fast path: bf16 MXU operands with f32 accumulation.
    out_bf16 = residual_block(x, w1, b1, w2, b2, use_bf16_matmul=True)
    jax.block_until_ready(out_bf16)
    assert out_bf16.shape == (B, output_dim)
    assert jnp.allclose(out_bf16, ref, atol=5e-2, rtol=5e-2), "bf16 kernel mismatch vs reference"

    print("KERNEL_OK")
</pallas_src>

<mosaic_0001>
module attributes {stable_mosaic.version = 11 : i64} {
  func.func @residual_block_kernel(%arg0: i32, %arg1: memref<32x128xf32, #tpu.memory_space<vmem>>, %arg2: memref<128x128xf32, #tpu.memory_space<vmem>>, %arg3: memref<1x128xf32, #tpu.memory_space<vmem>>, %arg4: memref<128x128xf32, #tpu.memory_space<vmem>>, %arg5: memref<1x128xf32, #tpu.memory_space<vmem>>, %arg6: memref<32x128xf32, #tpu.memory_space<vmem>>) attributes {dimension_semantics = [#tpu.dimension_semantics<parallel>], iteration_bounds = array<i64: 2>, scalar_prefetch = 0 : i64, scratch_operands = 0 : i64, tpu.core_type = #tpu.core_type<tc>, window_params = [{transform_indices = @transform_0, window_bounds = array<i64: 32, 128>}, {pipeline_mode = #tpu.pipeline_mode<synchronous>, transform_indices = @transform_1, window_bounds = array<i64: 128, 128>}, {pipeline_mode = #tpu.pipeline_mode<synchronous>, transform_indices = @transform_2, window_bounds = array<i64: 1, 128>}, {pipeline_mode = #tpu.pipeline_mode<synchronous>, transform_indices = @transform_3, window_bounds = array<i64: 128, 128>}, {pipeline_mode = #tpu.pipeline_mode<synchronous>, transform_indices = @transform_4, window_bounds = array<i64: 1, 128>}, {transform_indices = @transform_5, window_bounds = array<i64: 32, 128>}]} {
    %c0 = arith.constant 0 : index
    %c0_0 = arith.constant 0 : index
    %0 = vector.load %arg1[%c0, %c0_0] : memref<32x128xf32, #tpu.memory_space<vmem>>, vector<32x128xf32>
    %c0_1 = arith.constant 0 : index
    %c0_2 = arith.constant 0 : index
    %1 = vector.load %arg2[%c0_1, %c0_2] : memref<128x128xf32, #tpu.memory_space<vmem>>, vector<128x128xf32>
    %cst = arith.constant dense<0.000000e+00> : vector<32x128xf32>
    %2 = tpu.matmul %0, %1, %cst {dimension_numbers = #tpu.dot_dimension_numbers<[1], [0], [0], [1], [0, 0, 1, 1], [], []>} : vector<32x128xf32>, vector<128x128xf32>, vector<32x128xf32> -> vector<32x128xf32>
    %c0_3 = arith.constant 0 : index
    %c0_4 = arith.constant 0 : index
    %3 = vector.load %arg3[%c0_3, %c0_4] : memref<1x128xf32, #tpu.memory_space<vmem>>, vector<1x128xf32>
    %4 = vector.broadcast %3 : vector<1x128xf32> to vector<32x128xf32>
    %5 = arith.addf %2, %4 : vector<32x128xf32>
    %cst_5 = arith.constant 0.000000e+00 : f32
    %6 = vector.broadcast %cst_5 : f32 to vector<32x128xf32>
    %7 = arith.cmpf oge, %5, %6 : vector<32x128xf32>
    %cst_6 = arith.constant 0.00999999977 : f32
    %8 = vector.broadcast %cst_6 : f32 to vector<32x128xf32>
    %9 = arith.mulf %8, %5 : vector<32x128xf32>
    %10 = arith.select %7, %5, %9 : vector<32x128xi1>, vector<32x128xf32>
    %c0_7 = arith.constant 0 : index
    %c0_8 = arith.constant 0 : index
    %11 = vector.load %arg4[%c0_7, %c0_8] : memref<128x128xf32, #tpu.memory_space<vmem>>, vector<128x128xf32>
    %cst_9 = arith.constant dense<0.000000e+00> : vector<32x128xf32>
    %12 = tpu.matmul %10, %11, %cst_9 {dimension_numbers = #tpu.dot_dimension_numbers<[1], [0], [0], [1], [0, 0, 1, 1], [], []>} : vector<32x128xf32>, vector<128x128xf32>, vector<32x128xf32> -> vector<32x128xf32>
    %c0_10 = arith.constant 0 : index
    %c0_11 = arith.constant 0 : index
    %13 = vector.load %arg5[%c0_10, %c0_11] : memref<1x128xf32, #tpu.memory_space<vmem>>, vector<1x128xf32>
    %14 = vector.broadcast %13 : vector<1x128xf32> to vector<32x128xf32>
    %15 = arith.addf %12, %14 : vector<32x128xf32>
    %16 = arith.addf %15, %0 : vector<32x128xf32>
    %cst_12 = arith.constant 0.000000e+00 : f32
    %17 = vector.broadcast %cst_12 : f32 to vector<32x128xf32>
    %18 = arith.cmpf oge, %16, %17 : vector<32x128xf32>
    %cst_13 = arith.constant 0.00999999977 : f32
    %19 = vector.broadcast %cst_13 : f32 to vector<32x128xf32>
    %20 = arith.mulf %19, %16 : vector<32x128xf32>
    %21 = arith.select %18, %16, %20 : vector<32x128xi1>, vector<32x128xf32>
    %c0_14 = arith.constant 0 : index
    %c0_15 = arith.constant 0 : index
    %22 = vector.load %arg6[%c0_14, %c0_15] : memref<32x128xf32, #tpu.memory_space<vmem>>, vector<32x128xf32>
    tpu.vector_store %arg6[%c0_14, %c0_15], %21 {strides = array<i32>} : memref<32x128xf32, #tpu.memory_space<vmem>>, vector<32x128xf32>,
    return
  }
  func.func @transform_0(%arg0: i32) -> (i32, i32) {
    %c0_i32 = arith.constant 0 : i32
    %c0_i32_0 = arith.constant 0 : i32
    return %arg0, %c0_i32 : i32, i32
  }
  func.func @transform_1(%arg0: i32) -> (i32, i32) {
    %c0_i32 = arith.constant 0 : i32
    %c0_i32_0 = arith.constant 0 : i32
    %c0_i32_1 = arith.constant 0 : i32
    return %c0_i32, %c0_i32_0 : i32, i32
  }
  func.func @transform_2(%arg0: i32) -> (i32, i32) {
    %c0_i32 = arith.constant 0 : i32
    %c0_i32_0 = arith.constant 0 : i32
    %c0_i32_1 = arith.constant 0 : i32
    return %c0_i32, %c0_i32_0 : i32, i32
  }
  func.func @transform_3(%arg0: i32) -> (i32, i32) {
    %c0_i32 = arith.constant 0 : i32
    %c0_i32_0 = arith.constant 0 : i32
    %c0_i32_1 = arith.constant 0 : i32
    return %c0_i32, %c0_i32_0 : i32, i32
  }
  func.func @transform_4(%arg0: i32) -> (i32, i32) {
    %c0_i32 = arith.constant 0 : i32
    %c0_i32_0 = arith.constant 0 : i32
    %c0_i32_1 = arith.constant 0 : i32
    return %c0_i32, %c0_i32_0 : i32, i32
  }
  func.func @transform_5(%arg0: i32) -> (i32, i32) {
    %c0_i32 = arith.constant 0 : i32
    %c0_i32_0 = arith.constant 0 : i32
    return %arg0, %c0_i32 : i32, i32
  }
}

</mosaic_0001>

<llo_original>
// kernel: tpu_custom_call.1
$region0: #{tpu_custom_call.1}
  #allocation0 [shape = 'u32[]', space=smem, size = 0x4, offset = 0x4, fixed_abs, tag = 'smem constant byte address 0x4 - core index']
  #allocation1 [shape = 'u32[72,128]{1,0:T(1,128)}', space=vmem, size = 0x9000, scoped, tag = 'internal scratch']
  %s0 = inlined_call_operand.hbm [shape: f32[64,128], index: 0, kind: input, shape index: {}]
  %s1 = inlined_call_operand.hbm [shape: f32[128,128], index: 1, kind: input, shape index: {}]
  %s2 = inlined_call_operand.vmem [shape: f32[1,128], index: 2, kind: input, shape index: {}]
  %s3 = inlined_call_operand.hbm [shape: f32[128,128], index: 3, kind: input, shape index: {}]
  %s4 = inlined_call_operand.vmem [shape: f32[1,128], index: 4, kind: input, shape index: {}]
  %s5 = inlined_call_operand.hbm [shape: f32[64,128], index: 5, kind: output, shape index: {}]
  %s6 = sld [smem:[#allocation0]]
  $region65: #{tpu_custom_call.1} parent=0
    _
  %s8 = ssub.s32 1, %s6
  %s9 = scalar_select 0, %s8, %s6
  $region1: #{tpu_custom_call.1} parent=0
    #allocation2 [shape = 'u8[32768]{0}', space=vmem, size = 0x8000, scoped, tag = 'input window, operand 0']
    #allocation3 [shape = 's32[2]{0}', space=sflag, size = 0x8, scoped, tag = 'scoped memory for tpu_custom_call.1']
    #allocation4 [shape = 's32[2]{0}', space=sflag, size = 0x8, scoped, tag = 'scoped memory for tpu_custom_call.1']
    #allocation5 [shape = 'u8[65536]{0}', space=vmem, size = 0x10000, scoped, tag = 'input window, operand 1, single buffered']
    #allocation6 [shape = 's32[1]{0}', space=sflag, size = 0x4, scoped, tag = 'scoped memory for tpu_custom_call.1']
    #allocation7 [shape = 'u8[65536]{0}', space=vmem, size = 0x10000, scoped, tag = 'input window, operand 3, single buffered']
    #allocation8 [shape = 'u8[32768]{0}', space=vmem, size = 0x8000, scoped, tag = 'output window, operand 0']
    %10 = vsyncpa [#allocation3], 0
    %s11 = scalar_lea.sflag [#allocation3], 1
    %12 = vsyncpa %s11, 0
    %13 = vsyncpa [#allocation6], 0
    %14 = vsyncpa [#allocation4], 0
    %s15 = scalar_lea.sflag [#allocation4], 1
    %16 = vsyncpa %s15, 0
    loop: start=0, step=1, limit=4
    $region2: #{tpu_custom_call.1} parent=1 // loop_pre_header
      _
    $region3: #{tpu_custom_call.1} parent=1 // loop_header
      %s18 = sphi 0, %s22
      %p19 = scmp.ge.s32.totalorder %s18, 4
      %s28 = sphi 0, %s30
      %s31 = sphi 0, %s28
      %s32 = sphi 0, %s31
      %s48 = sphi 0, %s32
      %s52 = sphi 0, %s52
      %s54 = sphi 0, %s52
      %s55 = sphi 0, %s54
      %s69 = sphi 0, %s55
      %s73 = sphi 0, %s73
      %s75 = sphi 0, %s73
      %s76 = sphi 0, %s75
      %s90 = sphi 0, %s76
      %s94 = sphi 0, %s94
      %s96 = sphi 0, %s94
      %s97 = sphi 0, %s96
      %s111 = sphi 0, %s97
      %s115 = sphi 0, %s115
      %s117 = sphi 0, %s115
      %s118 = sphi 0, %s117
      %s132 = sphi 0, %s118
      %s138 = sphi 0, %s140
      %s141 = sphi 0, %s138
      %s142 = sphi 0, %s141
      %s158 = sphi 0, %s142
    $region4: #{tpu_custom_call.1} parent=1 // loop_header_branch
      %21 = sbr.rel (%p19) target = $region8
    $region5: #{tpu_custom_call.1} parent=1 // loop_body
      %s23 = ssub.s32 %s18, 1
      %s24 = ssub.s32 %s18, 2
      %s25 = sadd.s32 %s18, 1
      %s26 = ssub.s32 %s18, %s25
      %p27 = scmp.eq.s32.totalorder %s26, 0
      %s29 = sadd.s32 %s28, 1
      %s30 = scalar_select %p27, %s28, %s29
      %p33 = pneg %p27
      %p34 = scmp.eq.s32.totalorder %s18, 1
      %p35 = por %p33, %p34
      %p36 = scmp.ne.s32.totalorder %s28, %s31
      %p37 = scmp.eq.s32.totalorder %s18, 0
      %p38 = por %p36, %p37
      %p39 = scmp.ne.s32.totalorder %s28, %s31
      %p40 = scmp.eq.s32.totalorder %s23, 1
      %p41 = por %p39, %p40
      %p42 = scmp.ne.s32.totalorder %s31, %s32
      %p43 = scmp.eq.s32.totalorder %s23, 0
      %p44 = por %p42, %p43
      %p45 = scmp.ne.s32.totalorder %s31, %s32
      %p46 = scmp.eq.s32.totalorder %s24, 1
      %p47 = por %p45, %p46
      %p49 = scmp.ne.s32.totalorder %s32, %s48
      %p50 = scmp.eq.s32.totalorder %s24, 0
      %p51 = por %p49, %p50
      %s53 = sadd.s32 %s52, 1
      %p56 = scmp.eq.s32.totalorder %s18, 1
      %p57 = scmp.ne.s32.totalorder %s52, %s54
      %p58 = scmp.eq.s32.totalorder %s18, 0
      %p59 = por %p57, %p58
      %p60 = scmp.ne.s32.totalorder %s52, %s54
      %p61 = scmp.eq.s32.totalorder %s23, 1
      %p62 = por %p60, %p61
      %p63 = scmp.ne.s32.totalorder %s54, %s55
      %p64 = scmp.eq.s32.totalorder %s23, 0
      %p65 = por %p63, %p64
      %p66 = scmp.ne.s32.totalorder %s54, %s55
      %p67 = scmp.eq.s32.totalorder %s24, 1
      %p68 = por %p66, %p67
      %p70 = scmp.ne.s32.totalorder %s55, %s69
      %p71 = scmp.eq.s32.totalorder %s24, 0
      %p72 = por %p70, %p71
      %s74 = sadd.s32 %s73, 1
      %p77 = scmp.eq.s32.totalorder %s18, 1
      %p78 = scmp.ne.s32.totalorder %s73, %s75
      %p79 = scmp.eq.s32.totalorder %s18, 0
      %p80 = por %p78, %p79
      %p81 = scmp.ne.s32.totalorder %s73, %s75
      %p82 = scmp.eq.s32.totalorder %s23, 1
      %p83 = por %p81, %p82
      %p84 = scmp.ne.s32.totalorder %s75, %s76
      %p85 = scmp.eq.s32.totalorder %s23, 0
      %p86 = por %p84, %p85
      %p87 = scmp.ne.s32.totalorder %s75, %s76
      %p88 = scmp.eq.s32.totalorder %s24, 1
      %p89 = por %p87, %p88
      %p91 = scmp.ne.s32.totalorder %s76, %s90
      %p92 = scmp.eq.s32.totalorder %s24, 0
      %p93 = por %p91, %p92
      %s95 = sadd.s32 %s94, 1
      %p98 = scmp.eq.s32.totalorder %s18, 1
      %p99 = scmp.ne.s32.totalorder %s94, %s96
      %p100 = scmp.eq.s32.totalorder %s18, 0
      %p101 = por %p99, %p100
      %p102 = scmp.ne.s32.totalorder %s94, %s96
      %p103 = scmp.eq.s32.totalorder %s23, 1
      %p104 = por %p102, %p103
      %p105 = scmp.ne.s32.totalorder %s96, %s97
      %p106 = scmp.eq.s32.totalorder %s23, 0
      %p107 = por %p105, %p106
      %p108 = scmp.ne.s32.totalorder %s96, %s97
      %p109 = scmp.eq.s32.totalorder %s24, 1
      %p110 = por %p108, %p109
      %p112 = scmp.ne.s32.totalorder %s97, %s111
      %p113 = scmp.eq.s32.totalorder %s24, 0
      %p114 = por %p112, %p113
      %s116 = sadd.s32 %s115, 1
      %p119 = scmp.eq.s32.totalorder %s18, 1
      %p120 = scmp.ne.s32.totalorder %s115, %s117
      %p121 = scmp.eq.s32.totalorder %s18, 0
      %p122 = por %p120, %p121
      %p123 = scmp.ne.s32.totalorder %s115, %s117
      %p124 = scmp.eq.s32.totalorder %s23, 1
      %p125 = por %p123, %p124
      %p126 = scmp.ne.s32.totalorder %s117, %s118
      %p127 = scmp.eq.s32.totalorder %s23, 0
      %p128 = por %p126, %p127
      %p129 = scmp.ne.s32.totalorder %s117, %s118
      %p130 = scmp.eq.s32.totalorder %s24, 1
      %p131 = por %p129, %p130
      %p133 = scmp.ne.s32.totalorder %s118, %s132
      %p134 = scmp.eq.s32.totalorder %s24, 0
      %p135 = por %p133, %p134
      %s136 = ssub.s32 %s18, %s25
      %p137 = scmp.eq.s32.totalorder %s136, 0
      %s139 = sadd.s32 %s138, 1
      %s140 = scalar_select %p137, %s138, %s139
      %p143 = pneg %p137
      %p144 = scmp.eq.s32.totalorder %s18, 1
      %p145 = por %p143, %p144
      %p146 = scmp.ne.s32.totalorder %s138, %s141
      %p147 = scmp.eq.s32.totalorder %s18, 0
      %p148 = por %p146, %p147
      %p149 = scmp.ne.s32.totalorder %s138, %s141
      %p150 = scmp.eq.s32.totalorder %s23, 1
      %p151 = por %p149, %p150
      %p152 = scmp.ne.s32.totalorder %s141, %s142
      %p153 = scmp.eq.s32.totalorder %s23, 0
      %p154 = por %p152, %p153
      %p155 = scmp.ne.s32.totalorder %s141, %s142
      %p156 = scmp.eq.s32.totalorder %s24, 1
      %p157 = por %p155, %p156
      %p159 = scmp.ne.s32.totalorder %s142, %s158
      %p160 = scmp.eq.s32.totalorder %s24, 0
      %p161 = por %p159, %p160
      %p162 = scmp.le.s32.totalorder 1, %s18
      %p163 = scmp.lt.s32.totalorder %s18, 3
      %p164 = pnand %p162, %p163
      %p165 = pneg %p164
      // Predicated region
      $region9: #{tpu_custom_call.1} parent=5 // pred_check
        _
      $region10: #{tpu_custom_call.1} parent=5 // pred_check_branch
        %167 = sbr.rel (%p164) target = $region12
      $region11: #{tpu_custom_call.1} parent=5 // pred_region
        %s168 = ssub.s32 %s18, 1
        // Predicated region
        $region13: #{tpu_custom_call.1} parent=11 // pred_check
          %p169 = pneg %p65
        $region14: #{tpu_custom_call.1} parent=11 // pred_check_branch
          %171 = sbr.rel (%p169) target = $region16
        $region15: #{tpu_custom_call.1} parent=11 // pred_region
          %173 = vsyncadd [#allocation6], 0
          %s174 = sshll.u32 %s1, 4
          %s175 = int_to_ptr.hbm [resolvable:$true] %s174
          %s176 = sshll.u32 [#allocation5], 4
          %s177 = int_to_ptr.vmem [resolvable:$true] %s176
          %182 = dma.hbm_to_vmem [thread:$0]  %s175, 2048, %s177, [#allocation6], 128, 128, 8
        $region16: #{tpu_custom_call.1} parent=11 // pred_fallthru
          _
        // Predicated region
        $region17: #{tpu_custom_call.1} parent=11 // pred_check
          %p183 = pneg %p86
        $region18: #{tpu_custom_call.1} parent=11 // pred_check_branch
          %185 = sbr.rel (%p183) target = $region20
        $region19: #{tpu_custom_call.1} parent=11 // pred_region
          _
        $region20: #{tpu_custom_call.1} parent=11 // pred_fallthru
          _
        // Predicated region
        $region21: #{tpu_custom_call.1} parent=11 // pred_check
          %p186 = pneg %p107
        $region22: #{tpu_custom_call.1} parent=11 // pred_check_branch
          %188 = sbr.rel (%p186) target = $region24
        $region23: #{tpu_custom_call.1} parent=11 // pred_region
          %190 = vsyncadd [#allocation6], 0
          %s191 = sshll.u32 %s3, 4
          %s192 = int_to_ptr.hbm [resolvable:$true] %s191
          %s193 = sshll.u32 [#allocation7], 4
          %s194 = int_to_ptr.vmem [resolvable:$true] %s193
          %199 = dma.hbm_to_vmem [thread:$0]  %s192, 2048, %s194, [#allocation6], 128, 128, 8
        $region24: #{tpu_custom_call.1} parent=11 // pred_fallthru
          _
        // Predicated region
        $region25: #{tpu_custom_call.1} parent=11 // pred_check
          %p200 = pneg %p128
        $region26: #{tpu_custom_call.1} parent=11 // pred_check_branch
          %202 = sbr.rel (%p200) target = $region28
        $region27: #{tpu_custom_call.1} parent=11 // pred_region
          _
        $region28: #{tpu_custom_call.1} parent=11 // pred_fallthru
          _
      $region12: #{tpu_custom_call.1} parent=5 // pred_fallthru
        _
      %p203 = scmp.lt.s32.totalorder %s18, 2
      // Predicated region
      $region29: #{tpu_custom_call.1} parent=5 // pred_check
        %p204 = pneg %p203
      $region30: #{tpu_custom_call.1} parent=5 // pred_check_branch
        %206 = sbr.rel (%p204) target = $region32
      $region31: #{tpu_custom_call.1} parent=5 // pred_region
        // Predicated region
        $region33: #{tpu_custom_call.1} parent=31 // pred_check
          %p207 = pneg %p38
        $region34: #{tpu_custom_call.1} parent=31 // pred_check_branch
          %209 = sbr.rel (%p207) target = $region36
        $region35: #{tpu_custom_call.1} parent=31 // pred_region
          %s210 = sand.u32 %s28, 1
          %s211 = scalar_lea.sflag [#allocation3], %s210
          %s212 = sand.u32 %s28, 1
          %s213 = smul.addr %s212, 32
          %s214 = scalar_lea.vmem [#allocation2], %s213
          %s215 = smul.u32 4, %s18
          %217 = vsyncadd %s211, 0
          %s218 = smul.addr %s215, 8
          %s219 = scalar_lea.hbm %s0, %s218
          %s220 = sshll.u32 %s219, 4
          %s221 = int_to_ptr.hbm [resolvable:$true] %s220
          %s222 = sshll.u32 %s214, 4
          %s223 = int_to_ptr.vmem [resolvable:$true] %s222
          %228 = dma.hbm_to_vmem [thread:$0]  %s221, 512, %s223, %s211, 128, 128, 8
        $region36: #{tpu_custom_call.1} parent=31 // pred_fallthru
          _
      $region32: #{tpu_custom_call.1} parent=5 // pred_fallthru
        _
      %p229 = scmp.le.s32.totalorder 1, %s18
      %p230 = scmp.lt.s32.totalorder %s18, 3
      %p231 = pnand %p229, %p230
      %p232 = pneg %p231
      // Predicated region
      $region37: #{tpu_custom_call.1} parent=5 // pred_check
        _
      $region38: #{tpu_custom_call.1} parent=5 // pred_check_branch
        %234 = sbr.rel (%p231) target = $region40
      $region39: #{tpu_custom_call.1} parent=5 // pred_region
        %s235 = ssub.s32 %s18, 1
        %s236 = sand.u32 %s31, 1
        %s237 = scalar_lea.sflag [#allocation3], %s236
        %s238 = sand.u32 %s31, 1
        %s239 = smul.addr %s238, 32
        %s240 = scalar_lea.vmem [#allocation2], %s239
        // Predicated region
        $region41: #{tpu_custom_call.1} parent=39 // pred_check
          %p241 = pneg %p44
        $region42: #{tpu_custom_call.1} parent=39 // pred_check_branch
          %243 = sbr.rel (%p241) target = $region44
        $region43: #{tpu_custom_call.1} parent=39 // pred_region
          %245 = dma.done %s237, 512
        $region44: #{tpu_custom_call.1} parent=39 // pred_fallthru
          _
        // Predicated region
        $region45: #{tpu_custom_call.1} parent=39 // pred_check
          %p246 = pneg %p65
        $region46: #{tpu_custom_call.1} parent=39 // pred_check_branch
          %248 = sbr.rel (%p246) target = $region48
        $region47: #{tpu_custom_call.1} parent=39 // pred_region
          %250 = dma.done [#allocation6], 2048
        $region48: #{tpu_custom_call.1} parent=39 // pred_fallthru
          _
        // Predicated region
        $region49: #{tpu_custom_call.1} parent=39 // pred_check
          %p251 = pneg %p107
        $region50: #{tpu_custom_call.1} parent=39 // pred_check_branch
          %253 = sbr.rel (%p251) target = $region52
        $region51: #{tpu_custom_call.1} parent=39 // pred_region
          %255 = dma.done [#allocation6], 2048
        $region52: #{tpu_custom_call.1} parent=39 // pred_fallthru
          _
        %s256 = sand.u32 %s31, 1
        %s257 = scalar_lea.sflag [#allocation3], %s256
        %s258 = sand.u32 %s31, 1
        %s259 = smul.addr %s258, 32
        %s260 = scalar_lea.vmem [#allocation2], %s259
        %p261 = pneg %p44
        %p262 = pneg %p41
        %p263 = pneg %p65
        %p264 = pneg %p62
        %p265 = pneg %p86
        %p266 = pneg %p83
        %p267 = pneg %p107
        %p268 = pneg %p104
        %p269 = pneg %p128
        %p270 = pneg %p125
        %p271 = pneg %p154
        %p272 = pneg %p151
        %s273 = sand.u32 %s141, 1
        %s274 = scalar_lea.sflag [#allocation4], %s273
        %s275 = sand.u32 %s141, 1
        %s276 = smul.addr %s275, 32
        %s277 = scalar_lea.vmem [#allocation8], %s276
        %s278 = smul.u32 4, %s23
        %s279 = smul.u32 4, %s23
        %v280 = vld [vmem:[%s240] sm:$0xff]
        %v281 = vld [vmem:[%s240 + $0x8] sm:$0xff]
        %v282 = vld [vmem:[%s240 + $0x10] sm:$0xff]
        %v283 = vld [vmem:[%s240 + $0x18] sm:$0xff]
        %v284 = vld [vmem:[#allocation5] sm:$0xff]
        %v285 = vld [vmem:[#allocation5 + $0x8] sm:$0xff]
        %v286 = vld [vmem:[#allocation5 + $0x10] sm:$0xff]
        %v287 = vld [vmem:[#allocation5 + $0x18] sm:$0xff]
        %v288 = vld [vmem:[#allocation5 + $0x20] sm:$0xff]
        %v289 = vld [vmem:[#allocation5 + $0x28] sm:$0xff]
        %v290 = vld [vmem:[#allocation5 + $0x30] sm:$0xff]
        %v291 = vld [vmem:[#allocation5 + $0x38] sm:$0xff]
        %v292 = vld [vmem:[#allocation5 + $0x40] sm:$0xff]
        %v293 = vld [vmem:[#allocation5 + $0x48] sm:$0xff]
        %v294 = vld [vmem:[#allocation5 + $0x50] sm:$0xff]
        %v295 = vld [vmem:[#allocation5 + $0x58] sm:$0xff]
        %v296 = vld [vmem:[#allocation5 + $0x60] sm:$0xff]
        %v297 = vld [vmem:[#allocation5 + $0x68] sm:$0xff]
        %v298 = vld [vmem:[#allocation5 + $0x70] sm:$0xff]
        %v299 = vld [vmem:[#allocation5 + $0x78] sm:$0xff]
        %v300 = vld [vmem:[%s2] sm:$0x1]
        %v302 = vperm.slane %v300, 0
        %304 = vmatpush.msra.mxu0 %v299
        %305 = vmatpush.msra.mxu0 %v298
        %306 = vmatpush.msra.mxu0 %v297
        %307 = vmatpush.msra.mxu0 %v296
        %308 = vmatpush.msra.mxu0 %v295
        %309 = vmatpush.msra.mxu0 %v294
        %310 = vmatpush.msra.mxu0 %v293
        %311 = vmatpush.msra.mxu0 %v292
        %312 = vmatpush.msra.mxu0 %v291
        %313 = vmatpush.msra.mxu0 %v290
        %314 = vmatpush.msra.mxu0 %v289
        %315 = vmatpush.msra.mxu0 %v288
        %316 = vmatpush.msra.mxu0 %v287
        %317 = vmatpush.msra.mxu0 %v286
        %318 = vmatpush.msra.mxu0 %v285
        %319 = vmatpush.msra.mxu0 %v284
        %320 = vmatmul.f32.gmra.mxu0 %v280
        %v321 = vpop.f32.mrf.mxu0
        %v322 = vadd.f32 %v302, %v321
        %323 = vmatmul.f32.gmra.mxu0 %v281
        %v324 = vpop.f32.mrf.mxu0
        %v325 = vadd.f32 %v302, %v324
        %326 = vmatmul.f32.gmra.mxu0 %v282
        %v327 = vpop.f32.mrf.mxu0
        %v328 = vadd.f32 %v302, %v327
        %329 = vmatmul.f32.gmra.mxu0 %v283
        %v330 = vpop.f32.mrf.mxu0
        %v331 = vadd.f32 %v302, %v330
        %332 = vdwg.mxu0
        %vm333 = vcmp.ge.f32.partialorder %v322, 0.0
        %vm334 = vcmp.ge.f32.partialorder %v325, 0.0
        %vm335 = vcmp.ge.f32.partialorder %v328, 0.0
        %vm336 = vcmp.ge.f32.partialorder %v331, 0.0
        %v337 = vmul.f32 %v322, 0.01
        %v338 = vmul.f32 %v325, 0.01
        %v339 = vmul.f32 %v328, 0.01
        %v340 = vmul.f32 %v331, 0.01
        %v341 = vsel %vm333, %v322, %v337
        %v342 = vsel %vm334, %v325, %v338
        %v343 = vsel %vm335, %v328, %v339
        %v344 = vsel %vm336, %v331, %v340
        %v345 = vld [vmem:[#allocation7] sm:$0xff]
        %v346 = vld [vmem:[#allocation7 + $0x8] sm:$0xff]
        %v347 = vld [vmem:[#allocation7 + $0x10] sm:$0xff]
        %v348 = vld [vmem:[#allocation7 + $0x18] sm:$0xff]
        %v349 = vld [vmem:[#allocation7 + $0x20] sm:$0xff]
        %v350 = vld [vmem:[#allocation7 + $0x28] sm:$0xff]
        %v351 = vld [vmem:[#allocation7 + $0x30] sm:$0xff]
        %v352 = vld [vmem:[#allocation7 + $0x38] sm:$0xff]
        %v353 = vld [vmem:[#allocation7 + $0x40] sm:$0xff]
        %v354 = vld [vmem:[#allocation7 + $0x48] sm:$0xff]
        %v355 = vld [vmem:[#allocation7 + $0x50] sm:$0xff]
        %v356 = vld [vmem:[#allocation7 + $0x58] sm:$0xff]
        %v357 = vld [vmem:[#allocation7 + $0x60] sm:$0xff]
        %v358 = vld [vmem:[#allocation7 + $0x68] sm:$0xff]
        %v359 = vld [vmem:[#allocation7 + $0x70] sm:$0xff]
        %v360 = vld [vmem:[#allocation7 + $0x78] sm:$0xff]
        %v361 = vld [vmem:[%s4] sm:$0x1]
        %v363 = vperm.slane %v361, 0
        %365 = vmatpush.msra.mxu0 %v360
        %366 = vmatpush.msra.mxu0 %v359
        %367 = vmatpush.msra.mxu0 %v358
        %368 = vmatpush.msra.mxu0 %v357
        %369 = vmatpush.msra.mxu0 %v356
        %370 = vmatpush.msra.mxu0 %v355
        %371 = vmatpush.msra.mxu0 %v354
        %372 = vmatpush.msra.mxu0 %v353
        %373 = vmatpush.msra.mxu0 %v352
        %374 = vmatpush.msra.mxu0 %v351
        %375 = vmatpush.msra.mxu0 %v350
        %376 = vmatpush.msra.mxu0 %v349
        %377 = vmatpush.msra.mxu0 %v348
        %378 = vmatpush.msra.mxu0 %v347
        %379 = vmatpush.msra.mxu0 %v346
        %380 = vmatpush.msra.mxu0 %v345
        %381 = vmatmul.f32.gmra.mxu0 %v341
        %v382 = vpop.f32.mrf.mxu0
        %v383 = vadd.f32 %v363, %v382
        %384 = vmatmul.f32.gmra.mxu0 %v342
        %v385 = vpop.f32.mrf.mxu0
        %v386 = vadd.f32 %v363, %v385
        %387 = vmatmul.f32.gmra.mxu0 %v343
        %v388 = vpop.f32.mrf.mxu0
        %v389 = vadd.f32 %v363, %v388
        %390 = vmatmul.f32.gmra.mxu0 %v344
        %v391 = vpop.f32.mrf.mxu0
        %v392 = vadd.f32 %v363, %v391
        %393 = vdwg.mxu0
        %v394 = vadd.f32 %v383, %v280
        %v395 = vadd.f32 %v386, %v281
        %v396 = vadd.f32 %v389, %v282
        %v397 = vadd.f32 %v392, %v283
        %vm398 = vcmp.ge.f32.partialorder %v394, 0.0
        %vm399 = vcmp.ge.f32.partialorder %v395, 0.0
        %vm400 = vcmp.ge.f32.partialorder %v396, 0.0
        %vm401 = vcmp.ge.f32.partialorder %v397, 0.0
        %v402 = vmul.f32 %v394, 0.01
        %v403 = vmul.f32 %v395, 0.01
        %v404 = vmul.f32 %v396, 0.01
        %v405 = vmul.f32 %v397, 0.01
        %v406 = vsel %vm398, %v394, %v402
        %v407 = vsel %vm399, %v395, %v403
        %v408 = vsel %vm400, %v396, %v404
        %v409 = vsel %vm401, %v397, %v405
        %410 = vst [vmem:[%s277] sm:$0xff] %v406
        %411 = vst [vmem:[%s277 + $0x8] sm:$0xff] %v407
        %412 = vst [vmem:[%s277 + $0x10] sm:$0xff] %v408
        %413 = vst [vmem:[%s277 + $0x18] sm:$0xff] %v409
        %s414 = sand.u32 %s141, 1
        %s415 = scalar_lea.sflag [#allocation4], %s414
        %s416 = sand.u32 %s141, 1
        %s417 = smul.addr %s416, 32
        %s418 = scalar_lea.vmem [#allocation8], %s417
        // Predicated region
        $region53: #{tpu_custom_call.1} parent=39 // pred_check
          %p419 = pneg %p151
        $region54: #{tpu_custom_call.1} parent=39 // pred_check_branch
          %421 = sbr.rel (%p419) target = $region56
        $region55: #{tpu_custom_call.1} parent=39 // pred_region
          %s422 = smul.u32 4, %s23
          %424 = vsyncadd %s415, 0
          %s425 = smul.addr %s422, 8
          %s426 = scalar_lea.hbm %s5, %s425
          %s427 = sshll.u32 %s418, 4
          %s428 = int_to_ptr.vmem [resolvable:$true] %s427
          %s429 = sshll.u32 %s426, 4
          %s430 = int_to_ptr.hbm [resolvable:$true] %s429
          %435 = dma.vmem_to_hbm [thread:$0]  %s428, 512, %s430, %s415, 128, 128, 8
        $region56: #{tpu_custom_call.1} parent=39 // pred_fallthru
          _
      $region40: #{tpu_custom_call.1} parent=5 // pred_fallthru
        _
      %p436 = scmp.le.s32.totalorder 2, %s18
      // Predicated region
      $region57: #{tpu_custom_call.1} parent=5 // pred_check
        %p437 = pneg %p436
      $region58: #{tpu_custom_call.1} parent=5 // pred_check_branch
        %439 = sbr.rel (%p437) target = $region60
      $region59: #{tpu_custom_call.1} parent=5 // pred_region
        %s440 = ssub.s32 %s18, 2
        // Predicated region
        $region61: #{tpu_custom_call.1} parent=59 // pred_check
          %p441 = pneg %p157
        $region62: #{tpu_custom_call.1} parent=59 // pred_check_branch
          %443 = sbr.rel (%p441) target = $region64
        $region63: #{tpu_custom_call.1} parent=59 // pred_region
          %s444 = sand.u32 %s142, 1
          %s445 = scalar_lea.sflag [#allocation4], %s444
          %s446 = sand.u32 %s142, 1
          %s447 = smul.addr %s446, 32
          %s448 = scalar_lea.vmem [#allocation8], %s447
          %450 = dma.done %s445, 512
        $region64: #{tpu_custom_call.1} parent=59 // pred_fallthru
          _
      $region60: #{tpu_custom_call.1} parent=5 // pred_fallthru
        _
    $region6: #{tpu_custom_call.1} parent=1 // loop_footer
      %s22 = sadd.s32 1, %s18
    $region7: #{tpu_custom_call.1} parent=1 // loop_footer_branch
      %17 = sbr.rel target = $region3
    $region8: #{tpu_custom_call.1} parent=1 // loop_exit
      _
    %451 = vsyncpa [#allocation3], 1
    %s452 = scalar_lea.sflag [#allocation3], 1
    %453 = vsyncpa %s452, 1
    %454 = vsyncpa [#allocation6], 1
    %455 = vsyncpa [#allocation4], 1
    %s456 = scalar_lea.sflag [#allocation4], 1
    %457 = vsyncpa %s456, 1

</llo_original>
